<compile_context>
chip_gen: v7x
topology: tpu7x:2x2x1
jax: 0.10.0
libtpu: 0.0.40
codegen_flags: <defaults>
</compile_context>

<pallas_src>
import jax
import jax.numpy as jnp
from jax import lax
from jax.experimental import pallas as pl
from jax.experimental.pallas import tpu as pltpu


def _round_up(x, m):
    return ((x + m - 1) // m) * m


def _cdiv(a, b):
    return (a + b - 1) // b


def _make_onehot_kernel(single_vocab_tile, tv):
    """Returns (kernel, uses_scratch)."""
    if single_vocab_tile:
        # One vocab tile: no offset, no scratch -- just iota + compare + cast.
        def kernel(ids_ref, out_ref):
            ids = ids_ref[...]                                     # (TS, 1)
            ts = out_ref.shape[0]
            iota = lax.broadcasted_iota(jnp.int32, (ts, tv), 1)    # (TS, TV)
            out_ref[...] = (ids == iota).astype(out_ref.dtype)
        return kernel, False

    def kernel(ids_ref, out_ref, iota_ref):
        j = pl.program_id(1)

        # Write the plain lane iota once per row tile.  Vocab axis is
        # "arbitrary" (never megacore-sharded), so j == 0 is always the first
        # vocab step each core executes for a given row tile.
        @pl.when(j == 0)
        def _():
            iota_ref[...] = lax.broadcasted_iota(jnp.int32, iota_ref.shape, 1)

        # Shift the vocab-tile offset onto the (TS,1) ids instead of doing a
        # full-tile (TS,TV) add on the iota.
        ids_local = ids_ref[...] - j * tv                          # (TS, 1)
        out_ref[...] = (ids_local == iota_ref[...]).astype(out_ref.dtype)

    return kernel, True


def sp_pipeline_forward(ids, vocab_size, *, dtype=jnp.bfloat16,
                        row_tile=1024, vocab_tile=4096):
    """ids: (B, S) integer token/char ids -> (B, S, vocab_size) one-hot."""
    B, S = ids.shape
    R = B * S
    V = int(vocab_size)
    itemsize = jnp.dtype(dtype).itemsize

    # Sublane multiple for the output dtype: 8 (f32) / 16 (bf16) / 32 (int8).
    sub = max(8, 32 // itemsize)

    # --- tile sizing: lane-dense vocab tiles, sublane-aligned row tiles ---
    TV = _round_up(min(vocab_tile, _round_up(V, 128)), 128)
    TS = _round_up(min(row_tile, _round_up(R, sub)), sub)

    n_vocab_tiles = _cdiv(V, TV)
    n_row_tiles = _cdiv(R, TS)

    # Keep both TensorCores busy on v7x: if the (megacore-sharded) row axis
    # has only one tile but there is enough work, split it in two.
    if n_row_tiles == 1 and R > sub:
        TS = _round_up(_cdiv(R, 2), sub)
        n_row_tiles = _cdiv(R, TS)

    grid = (n_row_tiles, n_vocab_tiles)

    # --- ids: flatten to (R, 1) int32; no padding needed (edge is masked) ---
    ids2 = ids.reshape(R, 1).astype(jnp.int32)

    kernel, uses_scratch = _make_onehot_kernel(n_vocab_tiles == 1, TV)
    scratch_shapes = (
        [pltpu.VMEM((TS, TV), jnp.int32)] if uses_scratch else []
    )

    # --- scoped-VMEM budget ---
    #  * double-buffered output tile
    #  * double-buffered ids tile (lane-padded (TS,1) -> (TS,128) int32)
    #  * optional iota scratch (single-buffered)
    #  * headroom for Mosaic internal scratch
    need = (2 * TS * TV * itemsize
            + 2 * TS * 128 * 4
            + (TS * TV * 4 if uses_scratch else 0)
            + (2 << 20))
    vmem_limit = int(max(need, 16 << 20))

    out = pl.pallas_call(
        kernel,
        out_shape=jax.ShapeDtypeStruct((R, V), dtype),
        grid=grid,
        in_specs=[
            # ids tile depends only on the row-tile index; because the block
            # index is unchanged across consecutive vocab steps, Pallas skips
            # the re-DMA of ids (keep vocab as the innermost grid axis).
            pl.BlockSpec((TS, 1), lambda i, j: (i, 0)),
        ],
        out_specs=pl.BlockSpec((TS, TV), lambda i, j: (i, j)),
        scratch_shapes=scratch_shapes,
        compiler_params=pltpu.CompilerParams(
            # Row axis parallel (megacore); vocab axis arbitrary so the
            # iota-scratch init at j == 0 is safe on every core.
            dimension_semantics=("parallel", "arbitrary"),
            vmem_limit_bytes=vmem_limit),
        cost_estimate=pl.CostEstimate(
            flops=R * V,
            transcendentals=0,
            bytes_accessed=R * V * itemsize + R * 4),
    )(ids2)

    # (B*S, V) -> (B, S, V) is a free, contiguous reshape (no slice copy).
    return out.reshape(B, S, V)


if __name__ == "__main__":
    key = jax.random.PRNGKey(0)

    # case 1: small, fully aligned shapes (single vocab tile, single-ish grid)
    B, S, V = 2, 8, 128
    ids = jax.random.randint(key, (B, S), 0, V, dtype=jnp.int32)
    out = jax.block_until_ready(sp_pipeline_forward(ids, V))
    ref = jax.nn.one_hot(ids, V, dtype=out.dtype)
    assert out.shape == (B, S, V)
    assert out.dtype == jnp.bfloat16
    assert bool(jnp.allclose(out, ref))

    # case 2: non-aligned rows and vocab -> ragged (masked) edge tiles,
    # no padded writes, no post-kernel slice.
    B2, S2, V2 = 2, 37, 200
    ids2 = jax.random.randint(jax.random.PRNGKey(1), (B2, S2), 0, V2,
                              dtype=jnp.int32)
    out2 = jax.block_until_ready(sp_pipeline_forward(ids2, V2))
    ref2 = jax.nn.one_hot(ids2, V2, dtype=out2.dtype)
    assert out2.shape == (B2, S2, V2)
    assert bool(jnp.allclose(out2, ref2))

    # case 3: multiple vocab tiles -> exercises the iota-scratch kernel,
    # the ids -= j*TV offset and the ragged final vocab tile.
    B3, S3, V3 = 2, 16, 520
    ids3 = jax.random.randint(jax.random.PRNGKey(2), (B3, S3), 0, V3,
                              dtype=jnp.int32)
    out3 = jax.block_until_ready(
        sp_pipeline_forward(ids3, V3, vocab_tile=256))
    ref3 = jax.nn.one_hot(ids3, V3, dtype=out3.dtype)
    assert out3.shape == (B3, S3, V3)
    assert bool(jnp.allclose(out3, ref3))

    print("KERNEL_OK")
</pallas_src>

<mosaic_0001>
module attributes {stable_mosaic.version = 11 : i64} {
  func.func @kernel(%arg0: i32, %arg1: i32, %arg2: memref<16x1xi32, #tpu.memory_space<vmem>>, %arg3: memref<16x128xbf16, #tpu.memory_space<vmem>>) attributes {dimension_semantics = [#tpu.dimension_semantics<parallel>, #tpu.dimension_semantics<arbitrary>], iteration_bounds = array<i64: 1, 1>, scalar_prefetch = 0 : i64, scratch_operands = 0 : i64, tpu.core_type = #tpu.core_type<tc>, window_params = [{transform_indices = @transform_0, window_bounds = array<i64: 16, 1>}, {transform_indices = @transform_1, window_bounds = array<i64: 16, 128>}]} {
    %c0 = arith.constant 0 : index
    %c0_0 = arith.constant 0 : index
    %0 = vector.load %arg2[%c0, %c0_0] : memref<16x1xi32, #tpu.memory_space<vmem>>, vector<16x1xi32>
    %1 = tpu.iota {dimensions = array<i32: 1>} : vector<16x128xi32>
    %2 = vector.broadcast %0 : vector<16x1xi32> to vector<16x128xi32>
    %3 = arith.cmpi eq, %2, %1 : vector<16x128xi32>
    %4 = arith.extui %3 : vector<16x128xi1> to vector<16x128xi32>
    %5 = arith.sitofp %4 : vector<16x128xi32> to vector<16x128xf32>
    %6 = arith.truncf %5 : vector<16x128xf32> to vector<16x128xbf16>
    %c0_1 = arith.constant 0 : index
    %c0_2 = arith.constant 0 : index
    %7 = vector.load %arg3[%c0_1, %c0_2] : memref<16x128xbf16, #tpu.memory_space<vmem>>, vector<16x128xbf16>
    tpu.vector_store %arg3[%c0_1, %c0_2], %6 {strides = array<i32>} : memref<16x128xbf16, #tpu.memory_space<vmem>>, vector<16x128xbf16>,
    return
  }
  func.func @transform_0(%arg0: i32, %arg1: i32) -> (i32, i32) {
    %c0_i32 = arith.constant 0 : i32
    %c0_i32_0 = arith.constant 0 : i32
    return %arg0, %c0_i32 : i32, i32
  }
  func.func @transform_1(%arg0: i32, %arg1: i32) -> (i32, i32) {
    %c0_i32 = arith.constant 0 : i32
    return %arg0, %arg1 : i32, i32
  }
}

</mosaic_0001>

<llo_original>
// kernel: tpu_custom_call.1
$region0: #{tpu_custom_call.1}
  #allocation0 [shape = 'u32[]', space=smem, size = 0x4, offset = 0x4, fixed_abs, tag = 'smem constant byte address 0x4 - core index']
  #allocation1 [shape = 'u32[144,128]{1,0:T(1,128)}', space=vmem, size = 0x12000, scoped, tag = 'internal scratch']
  %s0 = inlined_call_operand.vmem [shape: s32[16,1], index: 0, kind: input, shape index: {}]
  %s1 = inlined_call_operand.hbm [shape: bf16[16,128], index: 1, kind: output, shape index: {}]
  %s2 = sld [smem:[#allocation0]]
  $region14: #{tpu_custom_call.1} parent=0
    _
  %s4 = ssub.s32 1, %s2
  %s5 = scalar_select 0, %s4, %s2
  $region1: #{tpu_custom_call.1} parent=0
    #allocation2 [shape = 'u8[4096]{0}', space=vmem, size = 0x1000, scoped, tag = 'output window, operand 0, single buffered']
    #allocation3 [shape = 's32[1]{0}', space=sflag, size = 0x4, scoped, tag = 'scoped memory for tpu_custom_call.1']
    %6 = vsyncpa [#allocation3], 0
    // Predicated region
    $region2: #{tpu_custom_call.1} parent=1 // pred_check
      _
    $region3: #{tpu_custom_call.1} parent=1 // pred_check_branch
      %8 = sbr.rel (0) target = $region5
    $region4: #{tpu_custom_call.1} parent=1 // pred_region
      _
    $region5: #{tpu_custom_call.1} parent=1 // pred_fallthru
      _
    %v9 = vld [vmem:[%s0] sm:$0xff]
    %v10 = vld [vmem:[%s0 + $0x8] sm:$0xff]
    %v11 = vlaneseq
    %v12 = vand.u32 %v11, 127
    %13 = vset.pattern.permute.xlu0 0
    %14 = vperm.xlu0 %13, %v9
    %v15 = vpop.permute.xlu0 %14
    %16 = vset.pattern.permute.xlu0 0
    %17 = vperm.xlu0 %16, %v10
    %v18 = vpop.permute.xlu0 %17
    %vm19 = vcmp.eq.s32.totalorder %v15, %v12
    %vm20 = vcmp.eq.s32.totalorder %v18, %v12
    %v21 = vsel %vm19, 1, 0
    %v22 = vsel %vm20, 1, 0
    %v23 = vcvt.s32.f32 %v21
    %v24 = vcvt.s32.f32 %v22
    %v25 = vpack.c.bf16 %v24, %v23
    %v27 = vunpack.c.l.b16 %v25
    %v28 = vunpack.c.h.b16 %v25
    %v29 = vpack.c.b16 %v27, %v27
    %v30 = vpack.c.b16 %v28, %v28
    %33 = vst [vmem:[#allocation2] sm:$0xf] %v29
    %34 = vst [vmem:[#allocation2 + $0x4] sm:$0xf] %v30
    // Predicated region
    $region6: #{tpu_custom_call.1} parent=1 // pred_check
      _
    $region7: #{tpu_custom_call.1} parent=1 // pred_check_branch
      %36 = sbr.rel (0) target = $region9
    $region8: #{tpu_custom_call.1} parent=1 // pred_region
      %s38 = ssub.s32 128, 128
      %39 = vsyncadd [#allocation3], %s38
      %s40 = sshll.u32 [#allocation2], 4
      %s41 = int_to_ptr.vmem [resolvable:$true] %s40
      %46 = dma.vmem_to_hbm [thread:$0]  %s41, 128, %s1, [#allocation3], 64, 64, 4
    $region9: #{tpu_custom_call.1} parent=1 // pred_fallthru
      _
    // Predicated region
    $region10: #{tpu_custom_call.1} parent=1 // pred_check
      _
    $region11: #{tpu_custom_call.1} parent=1 // pred_check_branch
      %48 = sbr.rel (0) target = $region13
    $region12: #{tpu_custom_call.1} parent=1 // pred_region
      %49 = dma.done [#allocation3], 128
    $region13: #{tpu_custom_call.1} parent=1 // pred_fallthru
      _
    %50 = vsyncpa [#allocation3], 1

</llo_original>
